<compile_context>
chip_gen: v6e
topology: v6e:2x2x1
jax: 0.10.0
libtpu: 0.0.40
codegen_flags: <defaults>
</compile_context>

<pallas_src>
import functools

import jax
import jax.numpy as jnp
from jax import lax
from jax.experimental import pallas as pl
from jax.experimental.pallas import tpu as pltpu


def _round_up(v, m):
    return ((v + m - 1) // m) * m


def _cdiv(a, b):
    return -(-a // b)


def _linear_kernel(x_ref, wt_ref, b_ref, o_ref):
    """One (tm, tn) output tile; accumulates over the K grid axis directly
    into the f32 output block (resident in VMEM across k)."""
    k = pl.program_id(2)

    # bf16 x bf16 on the MXU, f32 accumulation.
    partial = jnp.dot(x_ref[...], wt_ref[...],
                      preferred_element_type=jnp.float32)

    @pl.when(k == 0)
    def _():
        # Bias fused into the first K step (broadcast (1,tn) -> (tm,tn)).
        o_ref[...] = partial + b_ref[...]

    @pl.when(k > 0)
    def _():
        o_ref[...] += partial


@functools.partial(jax.jit,
                   static_argnames=("tm", "tn", "tk", "compute_dtype"))
def full_layer_forward(x, weight, bias, *, tm=512, tn=1024, tk=1024,
                       compute_dtype=jnp.bfloat16):
    """Pallas forward of Full_layer (torch.nn.Linear(feature_num, class_num)).

    x      : (B, F)  float32
    weight : (C, F)  float32  (PyTorch Linear convention)
    bias   : (C,)    float32
    returns: (B, C)  float32
    """
    B, F = x.shape
    C, F2 = weight.shape
    assert F == F2, "weight shape must be (class_num, feature_num)"

    itemsize = jnp.dtype(compute_dtype).itemsize
    # Sublane grain depends on operand packing (f32: 8, bf16: 16, int8/fp8: 32).
    m_grain = {4: 8, 2: 16, 1: 32}.get(itemsize, 8)

    # ---- tile sizing -------------------------------------------------------
    # M: no array padding — cdiv grid + masked boundary blocks.
    tm = _round_up(min(tm, _round_up(B, m_grain)), m_grain)
    # N: multiple of 128 lanes; prefer 256-granularity (2x256 MXU on v6e/v7x).
    tn = min(tn, _round_up(C, 128))
    if tn > 256 and tn % 256 != 0:
        tn = (tn // 256) * 256
    # If the whole problem fits a single (M, N) tile, split N so at least two
    # "parallel" grid tiles exist (keeps both v7x TensorCores busy).
    if _cdiv(B, tm) == 1 and _cdiv(C, tn) == 1:
        tn_half = _round_up(_cdiv(C, 2), 128)
        if tn_half < tn:
            tn = tn_half
    # K: contraction axis must be exactly covered by the grid -> pad F
    # minimally (128-lane grain) and pick tk so tk * num_k_steps == Fp.
    Fp0 = _round_up(F, 128)
    kt = _cdiv(Fp0, tk)
    tk = _round_up(_cdiv(Fp0, kt), 128)
    Fp = tk * kt

    # ---- operand prep ------------------------------------------------------
    # Pre-transpose the (static) weight once -> canonical (tm,tk)x(tk,tn)
    # layout; zero-pad ONLY the contraction axis; store operands as bf16.
    xp = x
    wt = weight.T                                   # (F, C)
    if Fp != F:
        xp = jnp.pad(xp, ((0, 0), (0, Fp - F)))
        wt = jnp.pad(wt, ((0, Fp - F), (0, 0)))
    xp = xp.astype(compute_dtype)
    wt = wt.astype(compute_dtype)
    b2d = bias.astype(jnp.float32).reshape(1, C)

    gm = _cdiv(B, tm)
    gn = _cdiv(C, tn)
    grid = (gm, gn, kt)

    out = pl.pallas_call(
        _linear_kernel,
        out_shape=jax.ShapeDtypeStruct((B, C), jnp.float32),
        grid_spec=pltpu.PrefetchScalarGridSpec(
            num_scalar_prefetch=0,
            grid=grid,
            in_specs=[
                # x tile follows (i, k)
                pl.BlockSpec((tm, tk), lambda i, j, k: (i, k)),
                # W^T tile follows (k, j) — canonical matmul layout
                pl.BlockSpec((tk, tn), lambda i, j, k: (k, j)),
                # bias tile follows j only; reused across i and k
                pl.BlockSpec((1, tn), lambda i, j, k: (0, j)),
            ],
            out_specs=pl.BlockSpec((tm, tn), lambda i, j, k: (i, j)),
        ),
        compiler_params=pltpu.CompilerParams(
            dimension_semantics=("parallel", "parallel", "arbitrary"),
            vmem_limit_bytes=48 * 1024 * 1024,
        ),
        cost_estimate=pl.CostEstimate(
            flops=2 * B * C * Fp,
            transcendentals=0,
            # x is re-streamed once per N tile, W once per M tile.
            bytes_accessed=(itemsize * B * Fp * gn
                            + itemsize * Fp * C * gm
                            + 4 * B * C + 4 * C),
        ),
    )(xp, wt, b2d)
    return out


def _reference(x, weight, bias, compute_dtype=jnp.bfloat16):
    # Same bf16 input rounding as the kernel, exact f32 accumulation.
    xc = x.astype(compute_dtype).astype(jnp.float32)
    wc = weight.astype(compute_dtype).astype(jnp.float32)
    return jnp.dot(xc, wc.T, precision=lax.Precision.HIGHEST) + bias


if __name__ == "__main__":
    key = jax.random.PRNGKey(0)

    # --- Test 1: small shapes matching the module's intent (single tile). ---
    batch, feature_num, class_num = 8, 32, 16
    kx, kw, kb, key = jax.random.split(key, 4)
    bound = 1.0 / (feature_num ** 0.5)
    weight = jax.random.uniform(
        kw, (class_num, feature_num), jnp.float32, minval=-bound, maxval=bound)
    bias = jax.random.uniform(
        kb, (class_num,), jnp.float32, minval=-bound, maxval=bound)
    x = jax.random.normal(kx, (batch, feature_num), jnp.float32)

    out = jax.block_until_ready(full_layer_forward(x, weight, bias))
    ref = _reference(x, weight, bias)
    assert out.shape == (batch, class_num)
    assert out.dtype == jnp.float32
    assert jnp.allclose(out, ref, atol=1e-2, rtol=1e-2)

    # --- Test 2: larger, non-aligned shapes to exercise the cdiv grid,
    #     masked boundary blocks, F-axis padding and the >=2-N-tile split. ---
    batch2, feature2, class2 = 300, 1000, 384
    kx, kw, kb, key = jax.random.split(key, 4)
    bound2 = 1.0 / (feature2 ** 0.5)
    weight2 = jax.random.uniform(
        kw, (class2, feature2), jnp.float32, minval=-bound2, maxval=bound2)
    bias2 = jax.random.uniform(
        kb, (class2,), jnp.float32, minval=-bound2, maxval=bound2)
    x2 = jax.random.normal(kx, (batch2, feature2), jnp.float32)

    out2 = jax.block_until_ready(full_layer_forward(x2, weight2, bias2))
    ref2 = _reference(x2, weight2, bias2)
    assert out2.shape == (batch2, class2)
    assert jnp.allclose(out2, ref2, atol=1e-2, rtol=1e-2)

    print("KERNEL_OK")
</pallas_src>

<mosaic_0001>
module attributes {stable_mosaic.version = 11 : i64} {
  func.func @_linear_kernel(%arg0: i32, %arg1: i32, %arg2: i32, %arg3: memref<16x128xbf16, #tpu.memory_space<vmem>>, %arg4: memref<128x128xbf16, #tpu.memory_space<vmem>>, %arg5: memref<1x128xf32, #tpu.memory_space<vmem>>, %arg6: memref<16x128xf32, #tpu.memory_space<vmem>>) attributes {dimension_semantics = [#tpu.dimension_semantics<parallel>, #tpu.dimension_semantics<parallel>, #tpu.dimension_semantics<arbitrary>], iteration_bounds = array<i64: 1, 1, 1>, scalar_prefetch = 0 : i64, scratch_operands = 0 : i64, tpu.core_type = #tpu.core_type<tc>, window_params = [{transform_indices = @transform_0, window_bounds = array<i64: 16, 128>}, {transform_indices = @transform_1, window_bounds = array<i64: 128, 128>}, {transform_indices = @transform_2, window_bounds = array<i64: 1, 128>}, {transform_indices = @transform_3, window_bounds = array<i64: 16, 128>}]} {
    %c0 = arith.constant 0 : index
    %c0_0 = arith.constant 0 : index
    %0 = vector.load %arg3[%c0, %c0_0] : memref<16x128xbf16, #tpu.memory_space<vmem>>, vector<16x128xbf16>
    %c0_1 = arith.constant 0 : index
    %c0_2 = arith.constant 0 : index
    %1 = vector.load %arg4[%c0_1, %c0_2] : memref<128x128xbf16, #tpu.memory_space<vmem>>, vector<128x128xbf16>
    %cst = arith.constant dense<0.000000e+00> : vector<16x128xf32>
    %2 = tpu.matmul %0, %1, %cst {dimension_numbers = #tpu.dot_dimension_numbers<[1], [0], [0], [1], [0, 0, 1, 1], [], []>} : vector<16x128xbf16>, vector<128x128xbf16>, vector<16x128xf32> -> vector<16x128xf32>
    %c0_i32 = arith.constant 0 : i32
    %3 = arith.cmpi eq, %arg2, %c0_i32 : i32
    %4 = arith.extui %3 : i1 to i32
    %c0_i32_3 = arith.constant 0 : i32
    %5 = arith.cmpi ne, %4, %c0_i32_3 : i32
    scf.if %5 {
      %c0_6 = arith.constant 0 : index
      %c0_7 = arith.constant 0 : index
      %9 = vector.load %arg5[%c0_6, %c0_7] : memref<1x128xf32, #tpu.memory_space<vmem>>, vector<1x128xf32>
      %10 = vector.broadcast %9 : vector<1x128xf32> to vector<16x128xf32>
      %11 = arith.addf %2, %10 : vector<16x128xf32>
      %c0_8 = arith.constant 0 : index
      %c0_9 = arith.constant 0 : index
      %12 = vector.load %arg6[%c0_8, %c0_9] : memref<16x128xf32, #tpu.memory_space<vmem>>, vector<16x128xf32>
      tpu.vector_store %arg6[%c0_8, %c0_9], %11 {strides = array<i32>} : memref<16x128xf32, #tpu.memory_space<vmem>>, vector<16x128xf32>,
    } else {
    }
    %c0_i32_4 = arith.constant 0 : i32
    %6 = arith.cmpi sgt, %arg2, %c0_i32_4 : i32
    %7 = arith.extui %6 : i1 to i32
    %c0_i32_5 = arith.constant 0 : i32
    %8 = arith.cmpi ne, %7, %c0_i32_5 : i32
    scf.if %8 {
      %c0_6 = arith.constant 0 : index
      %c0_7 = arith.constant 0 : index
      %9 = vector.load %arg6[%c0_6, %c0_7] : memref<16x128xf32, #tpu.memory_space<vmem>>, vector<16x128xf32>
      %10 = arith.addf %9, %2 : vector<16x128xf32>
      %c0_8 = arith.constant 0 : index
      %c0_9 = arith.constant 0 : index
      %11 = vector.load %arg6[%c0_8, %c0_9] : memref<16x128xf32, #tpu.memory_space<vmem>>, vector<16x128xf32>
      tpu.vector_store %arg6[%c0_8, %c0_9], %10 {strides = array<i32>} : memref<16x128xf32, #tpu.memory_space<vmem>>, vector<16x128xf32>,
    } else {
    }
    return
  }
  func.func @transform_0(%arg0: i32, %arg1: i32, %arg2: i32) -> (i32, i32) {
    %c0_i32 = arith.constant 0 : i32
    return %arg0, %arg2 : i32, i32
  }
  func.func @transform_1(%arg0: i32, %arg1: i32, %arg2: i32) -> (i32, i32) {
    %c0_i32 = arith.constant 0 : i32
    return %arg2, %arg1 : i32, i32
  }
  func.func @transform_2(%arg0: i32, %arg1: i32, %arg2: i32) -> (i32, i32) {
    %c0_i32 = arith.constant 0 : i32
    %c0_i32_0 = arith.constant 0 : i32
    return %c0_i32, %arg1 : i32, i32
  }
  func.func @transform_3(%arg0: i32, %arg1: i32, %arg2: i32) -> (i32, i32) {
    %c0_i32 = arith.constant 0 : i32
    return %arg0, %arg1 : i32, i32
  }
}

</mosaic_0001>

<llo_original>
// kernel: full_layer_forward.1
$region0: #{full_layer_forward.1}
  #allocation0 [shape = 'u32[]', space=smem, size = 0x4, offset = 0x4, fixed_abs, tag = 'smem constant byte address 0x4 - core index']
  #allocation1 [shape = 'u32[144,128]{1,0:T(1,128)}', space=vmem, size = 0x12000, scoped, tag = 'internal scratch']
  %s0 = inlined_call_operand.vmem [shape: bf16[8,128], index: 0, kind: input, shape index: {}]
  %s1 = inlined_call_operand.vmem [shape: bf16[128,16], index: 1, kind: input, shape index: {}]
  %s2 = inlined_call_operand.vmem [shape: f32[1,16], index: 2, kind: input, shape index: {}]
  %s3 = inlined_call_operand.hbm [shape: f32[8,16], index: 3, kind: output, shape index: {}]
  %s4 = sld [smem:[#allocation0]]
  $region30: #{full_layer_forward.1} parent=0
    _
  %s6 = ssub.s32 1, %s4
  %s7 = scalar_select 0, %s6, %s4
  $region1: #{full_layer_forward.1} parent=0
    #allocation2 [shape = 'u8[8192]{0}', space=vmem, size = 0x2000, scoped, tag = 'output window, operand 0, single buffered']
    #allocation3 [shape = 's32[1]{0}', space=sflag, size = 0x4, scoped, tag = 'scoped memory for full_layer_forward.1']
    %8 = vsyncpa [#allocation3], 0
    // Predicated region
    $region2: #{full_layer_forward.1} parent=1 // pred_check
      _
    $region3: #{full_layer_forward.1} parent=1 // pred_check_branch
      %10 = sbr.rel (0) target = $region5
    $region4: #{full_layer_forward.1} parent=1 // pred_region
      _
    $region5: #{full_layer_forward.1} parent=1 // pred_fallthru
      _
    // Predicated region
    $region6: #{full_layer_forward.1} parent=1 // pred_check
      _
    $region7: #{full_layer_forward.1} parent=1 // pred_check_branch
      %12 = sbr.rel (0) target = $region9
    $region8: #{full_layer_forward.1} parent=1 // pred_region
      _
    $region9: #{full_layer_forward.1} parent=1 // pred_fallthru
      _
    // Predicated region
    $region10: #{full_layer_forward.1} parent=1 // pred_check
      _
    $region11: #{full_layer_forward.1} parent=1 // pred_check_branch
      %14 = sbr.rel (0) target = $region13
    $region12: #{full_layer_forward.1} parent=1 // pred_region
      _
    $region13: #{full_layer_forward.1} parent=1 // pred_fallthru
      _
    %v16 = vld [vmem:[%s0] sm:$0xf]
    %v17 = vld [vmem:[%s0 + $0x4] sm:$0xf]
    %v18 = vld [vmem:[%s1] sm:$0xf]
    %v19 = vld [vmem:[%s1 + $0x4] sm:$0xf]
    %v20 = vld [vmem:[%s1 + $0x8] sm:$0xf]
    %v21 = vld [vmem:[%s1 + $0xc] sm:$0xf]
    %v22 = vld [vmem:[%s1 + $0x10] sm:$0xf]
    %v23 = vld [vmem:[%s1 + $0x14] sm:$0xf]
    %v24 = vld [vmem:[%s1 + $0x18] sm:$0xf]
    %v25 = vld [vmem:[%s1 + $0x1c] sm:$0xf]
    %v26 = vld [vmem:[%s1 + $0x20] sm:$0xf]
    %v27 = vld [vmem:[%s1 + $0x24] sm:$0xf]
    %v28 = vld [vmem:[%s1 + $0x28] sm:$0xf]
    %v29 = vld [vmem:[%s1 + $0x2c] sm:$0xf]
    %v30 = vld [vmem:[%s1 + $0x30] sm:$0xf]
    %v31 = vld [vmem:[%s1 + $0x34] sm:$0xf]
    %v32 = vld [vmem:[%s1 + $0x38] sm:$0xf]
    %v33 = vld [vmem:[%s1 + $0x3c] sm:$0xf]
    %v36 = vunpack.c.l.b16 %v16
    %v37 = vunpack.c.l.b16 %v17
    %v38 = vpack.c.b16 %v37, %v36
    %v56 = vunpack.c.l.b16 %v18
    %v57 = vunpack.c.l.b16 %v19
    %v58 = vunpack.c.l.b16 %v20
    %v59 = vunpack.c.l.b16 %v21
    %v60 = vunpack.c.l.b16 %v22
    %v61 = vunpack.c.l.b16 %v23
    %v62 = vunpack.c.l.b16 %v24
    %v63 = vunpack.c.l.b16 %v25
    %v64 = vunpack.c.l.b16 %v26
    %v65 = vunpack.c.l.b16 %v27
    %v66 = vunpack.c.l.b16 %v28
    %v67 = vunpack.c.l.b16 %v29
    %v68 = vunpack.c.l.b16 %v30
    %v69 = vunpack.c.l.b16 %v31
    %v70 = vunpack.c.l.b16 %v32
    %v71 = vunpack.c.l.b16 %v33
    %v72 = vpack.c.b16 %v57, %v56
    %v73 = vpack.c.b16 %v59, %v58
    %v74 = vpack.c.b16 %v61, %v60
    %v75 = vpack.c.b16 %v63, %v62
    %v76 = vpack.c.b16 %v65, %v64
    %v77 = vpack.c.b16 %v67, %v66
    %v78 = vpack.c.b16 %v69, %v68
    %v79 = vpack.c.b16 %v71, %v70
    %88 = vmatprep.subr.bf16.mxu0 0
    %89 = vmatpush1.bf16.msra.mxu0 %v79
    %90 = vmatprep.subr.bf16.mxu0 0
    %91 = vmatpush1.bf16.msra.mxu0 %v78
    %92 = vmatprep.subr.bf16.mxu0 0
    %93 = vmatpush1.bf16.msra.mxu0 %v77
    %94 = vmatprep.subr.bf16.mxu0 0
    %95 = vmatpush1.bf16.msra.mxu0 %v76
    %96 = vmatprep.subr.bf16.mxu0 0
    %97 = vmatpush1.bf16.msra.mxu0 %v75
    %98 = vmatprep.subr.bf16.mxu0 0
    %99 = vmatpush1.bf16.msra.mxu0 %v74
    %100 = vmatprep.subr.bf16.mxu0 0
    %101 = vmatpush1.bf16.msra.mxu0 %v73
    %102 = vmatprep.subr.bf16.mxu0 0
    %103 = vmatpush1.bf16.msra.mxu0 %v72
    %104 = vmatprep.subr.bf16.mxu0 0
    %105 = vmatpush2.bf16.msra.mxu0 0
    %106 = vmatprep.subr.bf16.mxu0 0
    %107 = vmatpush2.bf16.msra.mxu0 0
    %108 = vmatprep.subr.bf16.mxu0 0
    %109 = vmatpush2.bf16.msra.mxu0 0
    %110 = vmatprep.subr.bf16.mxu0 0
    %111 = vmatpush2.bf16.msra.mxu0 0
    %112 = vmatprep.subr.bf16.mxu0 0
    %113 = vmatpush2.bf16.msra.mxu0 0
    %114 = vmatprep.subr.bf16.mxu0 0
    %115 = vmatpush2.bf16.msra.mxu0 0
    %116 = vmatprep.subr.bf16.mxu0 0
    %117 = vmatpush2.bf16.msra.mxu0 0
    %118 = vmatprep.subr.bf16.mxu0 0
    %119 = vmatpush2.bf16.msra.mxu0 0
    %120 = vmatprep.mubr.bf16.mxu0 0
    %121 = vmatmul.mubr.bf16.gmra.mxu0 %v38
    %v122 = vpop.f32.mrf.mxu0
    %v123 = vadd.f32 0.0, %v122
    %v124 = vpop.f32.mrf.mxu0
    %v125 = vpop.f32.mrf.mxu0
    %v126 = vadd.f32 0.0, %v125
    %v127 = vpop.f32.mrf.mxu0
    %128 = vdwg.mxu0
    %p129 = scmp.eq.s32.totalorder 0, 0
    // Predicated region
    $region14: #{full_layer_forward.1} parent=1 // pred_check
      %p130 = pneg %p129
    $region15: #{full_layer_forward.1} parent=1 // pred_check_branch
      %132 = sbr.rel (%p130) target = $region17
    $region16: #{full_layer_forward.1} parent=1 // pred_region
      %v133 = vld [vmem:[%s2] sm:$0x1]
      %v135 = vlaneseq
      %v136 = vshrl.u32 %v135, 7
      %v137 = vsub.s32 0, %v136
      %v138 = vrot.slane %v133, %v137
      %v140 = vadd.f32 %v123, %v138
      %v141 = vadd.f32 %v126, %v138
      %142 = vst [vmem:[#allocation2] sm:$0xff] %v140
      %143 = vst [vmem:[#allocation2 + $0x8] sm:$0xff] %v141
    $region17: #{full_layer_forward.1} parent=1 // pred_fallthru
      _
    %p144 = scmp.gt.s32.totalorder 0, 0
    // Predicated region
    $region18: #{full_layer_forward.1} parent=1 // pred_check
      %p145 = pneg %p144
    $region19: #{full_layer_forward.1} parent=1 // pred_check_branch
      %147 = sbr.rel (%p145) target = $region21
    $region20: #{full_layer_forward.1} parent=1 // pred_region
      %v148 = vld [vmem:[#allocation2] sm:$0xff]
      %v149 = vld [vmem:[#allocation2 + $0x8] sm:$0xff]
      %v150 = vadd.f32 %v148, %v123
      %v151 = vadd.f32 %v149, %v126
      %152 = vst [vmem:[#allocation2] sm:$0xff] %v150
      %153 = vst [vmem:[#allocation2 + $0x8] sm:$0xff] %v151
    $region21: #{full_layer_forward.1} parent=1 // pred_fallthru
      _
    // Predicated region
    $region22: #{full_layer_forward.1} parent=1 // pred_check
      _
    $region23: #{full_layer_forward.1} parent=1 // pred_check_branch
      %155 = sbr.rel (0) target = $region25
    $region24: #{full_layer_forward.1} parent=1 // pred_region
      %s157 = ssub.s32 256, 128
      %158 = vsyncadd [#allocation3], %s157
      %s159 = sshll.u32 [#allocation2], 4
      %s160 = int_to_ptr.vmem [resolvable:$true] %s159
      %165 = dma.vmem_to_hbm [thread:$0]  %s160, 128, %s3, [#allocation3], 128, 128, 8
    $region25: #{full_layer_forward.1} parent=1 // pred_fallthru
      _
    // Predicated region
    $region26: #{full_layer_forward.1} parent=1 // pred_check
      _
    $region27: #{full_layer_forward.1} parent=1 // pred_check_branch
      %167 = sbr.rel (0) target = $region29
    $region28: #{full_layer_forward.1} parent=1 // pred_region
      %168 = dma.done [#allocation3], 256
    $region29: #{full_layer_forward.1} parent=1 // pred_fallthru
      _
    %169 = vsyncpa [#allocation3], 1

</llo_original>
